<compile_context>
chip_gen: v5e
topology: v5e:2x2
jax: 0.10.0
libtpu: 0.0.40
codegen_flags: <defaults>
</compile_context>

<pallas_src>
import functools
import math

import jax
import jax.numpy as jnp
from jax import lax
from jax.experimental import pallas as pl
from jax.experimental.pallas import tpu as pltpu


_LANES = 128
_SUBLANES = 8
_VMEM_LIMIT = 40 * 1024 * 1024


def _round_up(x, m):
    return -(-x // m) * m


# -----------------------------------------------------------------------------
# Kernels
# -----------------------------------------------------------------------------

def _one_hot_unpacked_kernel(idx_ref, out_ref):
    """idx_ref: (TR, 1) int32; out_ref: (TR, TD) float32.

    out[r, c] = 1.0 iff (column-tile offset + c) == idx[r].
    The tile offset is folded into the per-row target (a (TR, 1) subtract), so
    per output element this is one iota, one compare and one cast.
    """
    tr, td = out_ref.shape
    d0 = pl.program_id(1) * td
    tgt = idx_ref[...] - d0                               # (TR, 1) int32, cheap
    col = lax.broadcasted_iota(jnp.int32, (tr, td), 1)
    # Out-of-range / negative (padding) indices never match -> all-zero row.
    out_ref[...] = (col == tgt).astype(out_ref.dtype)


def _one_hot_packed_kernel(aug_ref, e_ref, out_ref):
    """aug_ref: (TR, KP) f32 = [idx_0..idx_{k-1}, 1, 0, ...]; e_ref: (KP, W) f32.

    diff[r, m] = idx[r, m // depth] - (m % depth), computed as one MXU matmul
    against a constant selection+bias matrix, so the VPU only does one compare
    and one cast per output element (the k-way gather/OR lives on the idle
    MXU).  All participating values have magnitude < 256, so the matmul is
    exact even if lowered to a single bf16 pass; invalid indices (padding -1 or
    >= depth) can never produce diff == 0.
    """
    diff = jnp.dot(aug_ref[...], e_ref[...], preferred_element_type=jnp.float32)
    out_ref[...] = (diff == 0.0).astype(out_ref.dtype)


# -----------------------------------------------------------------------------
# Wrappers
# -----------------------------------------------------------------------------

def _one_hot_unpacked(idx, n, depth, block_bytes):
    """depth % 128 == 0 (fully lane-dense) or depth too large/odd to pack."""
    if depth % _LANES == 0:
        tile_d = _LANES
        for cand in (512, 384, 256, 128):
            if cand <= depth and depth % cand == 0:
                tile_d = cand
                break
    elif depth <= 131072:
        # Full row per block: only the last vreg of each row is a masked store
        # (depth that lands here is > 256, so the waste is < 1/3 worst case).
        tile_d = depth
    else:
        # TODO(synk): huge depths with poor lane alignment use ragged 512-wide
        # column tiles; Pallas masks the out-of-bounds tail of the edge block.
        tile_d = 512

    tile_rows = (block_bytes // (tile_d * 4)) // _SUBLANES * _SUBLANES
    tile_rows = max(_SUBLANES, min(tile_rows, 8192, _round_up(n, _SUBLANES)))
    rows_pad = _round_up(n, tile_rows)

    idx_p = idx
    if rows_pad != n:
        idx_p = jnp.pad(idx, (0, rows_pad - n), constant_values=-1)
    idx_p = idx_p.reshape(rows_pad, 1)

    grid = (rows_pad // tile_rows, pl.cdiv(depth, tile_d))
    out = pl.pallas_call(
        _one_hot_unpacked_kernel,
        out_shape=jax.ShapeDtypeStruct((rows_pad, depth), jnp.float32),
        grid_spec=pltpu.PrefetchScalarGridSpec(
            num_scalar_prefetch=0,
            grid=grid,
            in_specs=[pl.BlockSpec((tile_rows, 1), lambda i, j: (i, 0))],
            out_specs=pl.BlockSpec((tile_rows, tile_d), lambda i, j: (i, j)),
        ),
        compiler_params=pltpu.CompilerParams(
            dimension_semantics=("parallel", "parallel"),
            vmem_limit_bytes=_VMEM_LIMIT),
        cost_estimate=pl.CostEstimate(
            flops=2 * rows_pad * depth,
            transcendentals=0,
            bytes_accessed=rows_pad * depth * 4 + rows_pad * 4),
    )(idx_p)

    return out[:n] if rows_pad != n else out


def _one_hot_packed(idx, n, depth, k, width, block_bytes):
    """Lane-dense k-packed path (depth <= 256, width = lcm(depth, 128))."""
    kp = _round_up(k + 1, _SUBLANES)          # idx columns + bias column, padded
    n_rows = -(-n // k)

    tile_rows = (block_bytes // (width * 4)) // _SUBLANES * _SUBLANES
    tile_rows = max(_SUBLANES, min(tile_rows, 4096, _round_up(n_rows, _SUBLANES)))
    rows_pad = _round_up(n_rows, tile_rows)

    pad = rows_pad * k - n
    if pad:
        idx = jnp.pad(idx, (0, pad), constant_values=-1)
    idx_p = idx.reshape(rows_pad, k).astype(jnp.float32)

    # aug = [idx_0 .. idx_{k-1}, 1.0, 0 ...]  (f32, built once outside kernel)
    parts = [idx_p, jnp.ones((rows_pad, 1), jnp.float32)]
    if kp > k + 1:
        parts.append(jnp.zeros((rows_pad, kp - k - 1), jnp.float32))
    aug = jnp.concatenate(parts, axis=1)

    # E[j, m] = (j == m // depth)  for j < k      (selects idx[r, m // depth])
    # E[k, m] = -(m % depth)                      (bias row; rest zero)
    j = jnp.arange(kp, dtype=jnp.int32)[:, None]
    m = jnp.arange(width, dtype=jnp.int32)[None, :]
    sel = (j == m // depth).astype(jnp.float32)
    bias = jnp.where(j == k, (-(m % depth)).astype(jnp.float32), 0.0)
    e = sel + bias                               # (kp, width) f32 constant

    grid = (rows_pad // tile_rows,)
    out = pl.pallas_call(
        _one_hot_packed_kernel,
        out_shape=jax.ShapeDtypeStruct((rows_pad, width), jnp.float32),
        grid_spec=pltpu.PrefetchScalarGridSpec(
            num_scalar_prefetch=0,
            grid=grid,
            in_specs=[pl.BlockSpec((tile_rows, kp), lambda i: (i, 0)),
                      pl.BlockSpec((kp, width), lambda i: (0, 0))],
            out_specs=pl.BlockSpec((tile_rows, width), lambda i: (i, 0)),
        ),
        compiler_params=pltpu.CompilerParams(
            dimension_semantics=("parallel",),
            vmem_limit_bytes=_VMEM_LIMIT),
        cost_estimate=pl.CostEstimate(
            flops=2 * rows_pad * kp * width,
            transcendentals=0,
            bytes_accessed=(rows_pad * width * 4 + rows_pad * kp * 4
                            + kp * width * 4)),
    )(aug, e)

    # Contiguous (free) reshape back to one one-hot row per input index.
    out = out.reshape(rows_pad * k, depth)
    return out[:n] if rows_pad * k != n else out


def one_hot_encoder(x_in, depth):
    """Pallas equivalent of OneHotEncoder(depth).forward(x_in) -> (N, depth) f32."""
    assert depth >= 1
    idx = x_in.reshape(-1).astype(jnp.int32)      # .long()-like truncation
    n = idx.shape[0]

    k = _LANES // math.gcd(depth, _LANES)         # packing factor -> dense lanes
    width = k * depth                             # = lcm(depth, 128)

    if k > 1 and depth <= 256 and width <= 8192:
        # Small / lane-unaligned depths: pack k rows per slab row (no write
        # amplification, fully dense 128-lane stores).
        return _one_hot_packed(idx, n, depth, k, width, block_bytes=2 << 20)
    # depth % 128 == 0, or large depths where one masked vreg per row is noise.
    return _one_hot_unpacked(idx, n, depth, block_bytes=4 << 20)


if __name__ == "__main__":
    key = jax.random.PRNGKey(0)
    cases = [
        (16, 100),    # packed MXU path: k=8, width=128
        (128, 300),   # lane-aligned unpacked path (depth % 128 == 0)
        (100, 257),   # packed MXU path, non-divisor depth: k=32, width=3200
        (300, 50),    # unpacked fallback (depth > 256, poor lane alignment)
    ]
    for depth, n in cases:
        key, sub = jax.random.split(key)
        x = jax.random.randint(sub, (n,), 0, depth, dtype=jnp.int32)
        out = jax.block_until_ready(one_hot_encoder(x, depth))
        ref = jnp.eye(depth, dtype=jnp.float32)[x]
        assert out.shape == (n, depth) and out.dtype == jnp.float32
        assert bool(jnp.all(out == ref)), f"mismatch for depth={depth}, n={n}"
    print("KERNEL_OK")
</pallas_src>

<mosaic_0001>
module attributes {stable_mosaic.version = 11 : i64} {
  func.func @_one_hot_packed_kernel(%arg0: i32, %arg1: memref<16x16xf32, #tpu.memory_space<vmem>>, %arg2: memref<16x128xf32, #tpu.memory_space<vmem>>, %arg3: memref<16x128xf32, #tpu.memory_space<vmem>>) attributes {dimension_semantics = [#tpu.dimension_semantics<parallel>], iteration_bounds = array<i64: 1>, scalar_prefetch = 0 : i64, scratch_operands = 0 : i64, tpu.core_type = #tpu.core_type<tc>, window_params = [{transform_indices = @transform_0, window_bounds = array<i64: 16, 16>}, {pipeline_mode = #tpu.pipeline_mode<synchronous>, transform_indices = @transform_1, window_bounds = array<i64: 16, 128>}, {transform_indices = @transform_2, window_bounds = array<i64: 16, 128>}]} {
    %c0 = arith.constant 0 : index
    %c0_0 = arith.constant 0 : index
    %0 = vector.load %arg1[%c0, %c0_0] : memref<16x16xf32, #tpu.memory_space<vmem>>, vector<16x16xf32>
    %c0_1 = arith.constant 0 : index
    %c0_2 = arith.constant 0 : index
    %1 = vector.load %arg2[%c0_1, %c0_2] : memref<16x128xf32, #tpu.memory_space<vmem>>, vector<16x128xf32>
    %cst = arith.constant dense<0.000000e+00> : vector<16x128xf32>
    %2 = tpu.matmul %0, %1, %cst {dimension_numbers = #tpu.dot_dimension_numbers<[1], [0], [0], [1], [0, 0, 1, 1], [], []>} : vector<16x16xf32>, vector<16x128xf32>, vector<16x128xf32> -> vector<16x128xf32>
    %cst_3 = arith.constant 0.000000e+00 : f32
    %3 = vector.broadcast %cst_3 : f32 to vector<16x128xf32>
    %4 = arith.cmpf oeq, %2, %3 : vector<16x128xf32>
    %5 = arith.extui %4 : vector<16x128xi1> to vector<16x128xi32>
    %6 = arith.sitofp %5 : vector<16x128xi32> to vector<16x128xf32>
    %c0_4 = arith.constant 0 : index
    %c0_5 = arith.constant 0 : index
    %7 = vector.load %arg3[%c0_4, %c0_5] : memref<16x128xf32, #tpu.memory_space<vmem>>, vector<16x128xf32>
    tpu.vector_store %arg3[%c0_4, %c0_5], %6 {strides = array<i32>} : memref<16x128xf32, #tpu.memory_space<vmem>>, vector<16x128xf32>,
    return
  }
  func.func @transform_0(%arg0: i32) -> (i32, i32) {
    %c0_i32 = arith.constant 0 : i32
    %c0_i32_0 = arith.constant 0 : i32
    return %arg0, %c0_i32 : i32, i32
  }
  func.func @transform_1(%arg0: i32) -> (i32, i32) {
    %c0_i32 = arith.constant 0 : i32
    %c0_i32_0 = arith.constant 0 : i32
    %c0_i32_1 = arith.constant 0 : i32
    return %c0_i32, %c0_i32_0 : i32, i32
  }
  func.func @transform_2(%arg0: i32) -> (i32, i32) {
    %c0_i32 = arith.constant 0 : i32
    %c0_i32_0 = arith.constant 0 : i32
    return %arg0, %c0_i32 : i32, i32
  }
}

</mosaic_0001>

<llo_original>
// kernel: tpu_custom_call.1
$region0: #{tpu_custom_call.1}
  #allocation0 [shape = 'u32[]', space=smem, size = 0x4, offset = 0x4, fixed_abs, tag = 'smem constant byte address 0x4 - core index']
  #allocation1 [shape = 'u32[72,128]{1,0:T(1,128)}', space=vmem, size = 0x9000, scoped, tag = 'internal scratch']
  %s0 = inlined_call_operand.hbm [shape: f32[16,16], index: 0, kind: input, shape index: {}]
  %s1 = inlined_call_operand.hbm [shape: f32[16,128], index: 1, kind: input, shape index: {}]
  %s2 = inlined_call_operand.hbm [shape: f32[16,128], index: 2, kind: output, shape index: {}]
  %s3 = sld [smem:[#allocation0]]
  $region26: #{tpu_custom_call.1} parent=0
    _
  %s5 = ssub.s32 1, %s3
  %s6 = scalar_select 0, %s5, %s3
  $region1: #{tpu_custom_call.1} parent=0
    #allocation2 [shape = 'u8[8192]{0}', space=vmem, size = 0x2000, scoped, tag = 'input window, operand 0, single buffered']
    #allocation3 [shape = 's32[1]{0}', space=sflag, size = 0x4, scoped, tag = 'scoped memory for tpu_custom_call.1']
    #allocation4 [shape = 's32[1]{0}', space=sflag, size = 0x4, scoped, tag = 'scoped memory for tpu_custom_call.1']
    #allocation5 [shape = 'u8[8192]{0}', space=vmem, size = 0x2000, scoped, tag = 'input window, operand 1, single buffered']
    #allocation6 [shape = 's32[1]{0}', space=sflag, size = 0x4, scoped, tag = 'scoped memory for tpu_custom_call.1']
    #allocation7 [shape = 'u8[8192]{0}', space=vmem, size = 0x2000, scoped, tag = 'output window, operand 0, single buffered']
    %7 = vsyncpa [#allocation3], 0
    %8 = vsyncpa [#allocation6], 0
    %9 = vsyncpa [#allocation4], 0
    // Predicated region
    $region2: #{tpu_custom_call.1} parent=1 // pred_check
      _
    $region3: #{tpu_custom_call.1} parent=1 // pred_check_branch
      %11 = sbr.rel (0) target = $region5
    $region4: #{tpu_custom_call.1} parent=1 // pred_region
      %13 = vsyncadd [#allocation3], 0
      %s14 = sshll.u32 %s0, 4
      %s15 = int_to_ptr.hbm [resolvable:$true] %s14
      %s16 = sshll.u32 [#allocation2], 4
      %s17 = int_to_ptr.vmem [resolvable:$true] %s16
      %22 = dma.hbm_to_vmem [thread:$0]  %s15, 256, %s17, [#allocation3], 128, 128, 8
    $region5: #{tpu_custom_call.1} parent=1 // pred_fallthru
      _
    // Predicated region
    $region6: #{tpu_custom_call.1} parent=1 // pred_check
      _
    $region7: #{tpu_custom_call.1} parent=1 // pred_check_branch
      %24 = sbr.rel (0) target = $region9
    $region8: #{tpu_custom_call.1} parent=1 // pred_region
      %26 = vsyncadd [#allocation6], 0
      %s27 = sshll.u32 %s1, 4
      %s28 = int_to_ptr.hbm [resolvable:$true] %s27
      %s29 = sshll.u32 [#allocation5], 4
      %s30 = int_to_ptr.vmem [resolvable:$true] %s29
      %35 = dma.hbm_to_vmem [thread:$0]  %s28, 256, %s30, [#allocation6], 128, 128, 8
    $region9: #{tpu_custom_call.1} parent=1 // pred_fallthru
      _
    // Predicated region
    $region10: #{tpu_custom_call.1} parent=1 // pred_check
      _
    $region11: #{tpu_custom_call.1} parent=1 // pred_check_branch
      %37 = sbr.rel (0) target = $region13
    $region12: #{tpu_custom_call.1} parent=1 // pred_region
      %39 = dma.done [#allocation3], 256
    $region13: #{tpu_custom_call.1} parent=1 // pred_fallthru
      _
    // Predicated region
    $region14: #{tpu_custom_call.1} parent=1 // pred_check
      _
    $region15: #{tpu_custom_call.1} parent=1 // pred_check_branch
      %41 = sbr.rel (0) target = $region17
    $region16: #{tpu_custom_call.1} parent=1 // pred_region
      %43 = dma.done [#allocation6], 256
    $region17: #{tpu_custom_call.1} parent=1 // pred_fallthru
      _
    %v44 = vld [vmem:[#allocation2] sm:$0xff]
    %v45 = vld [vmem:[#allocation2 + $0x8] sm:$0xff]
    %v46 = vld [vmem:[#allocation5] sm:$0xff]
    %v47 = vld [vmem:[#allocation5 + $0x8] sm:$0xff]
    %vm48 = vcmask 130048
    %v50 = vsel %vm48, %v44, 0
    %v53 = vsel %vm48, %v45, 0
    %55 = vmatpush.msra.mxu0 0.0
    %56 = vmatpush.msra.mxu0 0.0
    %57 = vmatpush.msra.mxu0 0.0
    %58 = vmatpush.msra.mxu0 0.0
    %59 = vmatpush.msra.mxu0 0.0
    %60 = vmatpush.msra.mxu0 0.0
    %61 = vmatpush.msra.mxu0 0.0
    %62 = vmatpush.msra.mxu0 0.0
    %63 = vmatpush.msra.mxu0 0.0
    %64 = vmatpush.msra.mxu0 0.0
    %65 = vmatpush.msra.mxu0 0.0
    %66 = vmatpush.msra.mxu0 0.0
    %67 = vmatpush.msra.mxu0 0.0
    %68 = vmatpush.msra.mxu0 0.0
    %69 = vmatpush.msra.mxu0 %v47
    %70 = vmatpush.msra.mxu0 %v46
    %71 = vmatmul.f32.gmra.mxu0 %v50
    %v72 = vpop.f32.mrf.mxu0
    %v73 = vadd.f32 0.0, %v72
    %74 = vmatmul.f32.gmra.mxu0 %v53
    %v75 = vpop.f32.mrf.mxu0
    %v76 = vadd.f32 0.0, %v75
    %77 = vdwg.mxu0
    %vm78 = vcmp.eq.f32.partialorder %v73, 0.0
    %vm79 = vcmp.eq.f32.partialorder %v76, 0.0
    %v80 = vsel %vm78, 1, 0
    %v81 = vsel %vm79, 1, 0
    %v82 = vcvt.s32.f32 %v80
    %v83 = vcvt.s32.f32 %v81
    %84 = vst [vmem:[#allocation7] sm:$0xff] %v82
    %85 = vst [vmem:[#allocation7 + $0x8] sm:$0xff] %v83
    // Predicated region
    $region18: #{tpu_custom_call.1} parent=1 // pred_check
      _
    $region19: #{tpu_custom_call.1} parent=1 // pred_check_branch
      %87 = sbr.rel (0) target = $region21
    $region20: #{tpu_custom_call.1} parent=1 // pred_region
      %89 = vsyncadd [#allocation4], 0
      %s90 = sshll.u32 [#allocation7], 4
      %s91 = int_to_ptr.vmem [resolvable:$true] %s90
      %s92 = sshll.u32 %s2, 4
      %s93 = int_to_ptr.hbm [resolvable:$true] %s92
      %98 = dma.vmem_to_hbm [thread:$0]  %s91, 256, %s93, [#allocation4], 128, 128, 8
    $region21: #{tpu_custom_call.1} parent=1 // pred_fallthru
      _
    // Predicated region
    $region22: #{tpu_custom_call.1} parent=1 // pred_check
      _
    $region23: #{tpu_custom_call.1} parent=1 // pred_check_branch
      %100 = sbr.rel (0) target = $region25
    $region24: #{tpu_custom_call.1} parent=1 // pred_region
      %102 = dma.done [#allocation4], 256
    $region25: #{tpu_custom_call.1} parent=1 // pred_fallthru
      _
    %103 = vsyncpa [#allocation3], 1
    %104 = vsyncpa [#allocation6], 1
    %105 = vsyncpa [#allocation4], 1

</llo_original>
